<compile_context>
chip_gen: v7x
topology: tpu7x:2x2x1
jax: 0.10.0
libtpu: 0.0.40
codegen_flags: <defaults>
</compile_context>

<pallas_src>
import functools

import jax
import jax.numpy as jnp
from jax import lax
from jax.experimental import pallas as pl
from jax.experimental.pallas import tpu as pltpu


# --------------------------------------------------------------------------
# Tiling heuristics
# --------------------------------------------------------------------------
def _choose_block_k(K, n_rows, dtype_bytes, max_bytes=8 * 1024 * 1024):
    """Largest MXU-aligned K tile that divides K and keeps the double-buffered
    F tile well inside VMEM (conservative enough for v7x's 64 MiB)."""
    for tk in (4096, 2048, 1024, 512, 256, 128):
        if K % tk == 0 and 2 * n_rows * tk * dtype_bytes <= max_bytes:
            return tk
    return K  # small / odd K: single full-width block (always legal)


def _choose_block_m(n_rows):
    """Row block of the Gram output.  Single block for small channel counts
    (F is streamed from HBM exactly once); split only for very large n_rows
    so the accumulator stays bounded and the i axis can be sharded across
    v7x's two TensorCores."""
    if n_rows <= 256 or n_rows % 8 != 0:
        return n_rows
    for tm in (256, 128, 64, 32, 16, 8):
        if n_rows % tm == 0:
            return tm
    return n_rows


# --------------------------------------------------------------------------
# Shared per-(i, k) Gram accumulation:  acc[i-block, :] += F_i_k @ F_k^T
# --------------------------------------------------------------------------
def _gram_accumulate(f_ref, acc_ref, *, block_m):
    i = pl.program_id(0)
    k = pl.program_id(1)

    @pl.when(k == 0)
    def _init():
        acc_ref[...] = jnp.zeros_like(acc_ref)

    start = i * block_m
    if block_m % 8 == 0:
        start = pl.multiple_of(start, 8)
    lhs = f_ref[pl.ds(start, block_m), :]   # (block_m, block_k): this i-block's rows
    rhs = f_ref[...]                        # (n_rows, block_k): all rows
    # Contract the last (lane) axis of both operands: no transpose is
    # materialized and the MXU accumulates in f32.
    acc_ref[...] += lax.dot_general(
        lhs, rhs,
        dimension_numbers=(((1,), (1,)), ((), ())),
        preferred_element_type=jnp.float32,
    )


# --------------------------------------------------------------------------
# Kernel 1: Gram matrix G = F @ F^T (style-gram precompute, SLoss.__init__)
# --------------------------------------------------------------------------
def _gram_kernel(f_ref, g_ref, acc_ref, *, block_m):
    _gram_accumulate(f_ref, acc_ref, block_m=block_m)

    @pl.when(pl.program_id(1) == pl.num_programs(1) - 1)
    def _finalize():
        g_ref[...] = acc_ref[...].astype(g_ref.dtype)


def gram_pallas(f, *, block_k=None, block_m=None):
    """f: (n_rows, K) feature matrix -> (n_rows, n_rows) float32 Gram matrix."""
    n_rows, K = f.shape
    tm = block_m or _choose_block_m(n_rows)
    if n_rows % tm != 0:
        tm = n_rows
    tk = block_k if (block_k is not None and K % block_k == 0) else _choose_block_k(
        K, n_rows, f.dtype.itemsize)
    n_i, n_k = n_rows // tm, K // tk

    grid_spec = pltpu.PrefetchScalarGridSpec(
        num_scalar_prefetch=0,
        grid=(n_i, n_k),
        in_specs=[pl.BlockSpec((n_rows, tk), lambda i, k: (0, k))],
        out_specs=pl.BlockSpec((tm, n_rows), lambda i, k: (i, 0)),
        scratch_shapes=[pltpu.VMEM((tm, n_rows), jnp.float32)],
    )
    return pl.pallas_call(
        functools.partial(_gram_kernel, block_m=tm),
        out_shape=jax.ShapeDtypeStruct((n_rows, n_rows), jnp.float32),
        grid_spec=grid_spec,
        compiler_params=pltpu.CompilerParams(
            dimension_semantics=("parallel", "arbitrary"),
            vmem_limit_bytes=48 * 1024 * 1024,
        ),
    )(f)


# --------------------------------------------------------------------------
# Kernel 2: fused style loss
#   loss = sum((F @ F^T - G_style)^2) / (4 * (B*N)^2 * (W*H)^2)
# --------------------------------------------------------------------------
def _sloss_kernel(f_ref, gs_ref, loss_ref, acc_ref, *, block_m, inv_denom):
    _gram_accumulate(f_ref, acc_ref, block_m=block_m)

    @pl.when(pl.program_id(1) == pl.num_programs(1) - 1)
    def _finalize():
        diff = acc_ref[...] - gs_ref[...].astype(jnp.float32)
        # Hierarchical reduction: per-row partials first, collapse once.
        row_sq = jnp.sum(diff * diff, axis=-1, keepdims=True)   # (block_m, 1)
        partial = jnp.sum(row_sq) * inv_denom                   # f32 scalar
        # Lane-dense (1, 8, 128) splat per i-block; the wrapper reads [i, 0, 0].
        loss_ref[...] = jnp.broadcast_to(partial, loss_ref.shape).astype(jnp.float32)


def sloss_pallas(x, style_gram, w=1.0, *, block_k=None, block_m=None):
    """Forward pass of SLoss.

    x          : (B, N, W, H) feature map (NCHW, like PyTorch), any float dtype.
    style_gram : (B*N, B*N) precomputed Gram of the style feature map (f32).
    Returns (x, loss); PyTorch's forward returns x and stashes loss on the
    module.  `w` is stored-but-unused in the reference forward (kept for parity).
    """
    B, N, W, H = x.shape
    n_rows, K = B * N, W * H
    # Keep native dtype: no f32 upcast copy of F in HBM; the MXU accumulates
    # in f32 via preferred_element_type inside the kernel.
    f = x.reshape(n_rows, K)

    tm = block_m or _choose_block_m(n_rows)
    if n_rows % tm != 0:
        tm = n_rows
    tk = block_k if (block_k is not None and K % block_k == 0) else _choose_block_k(
        K, n_rows, f.dtype.itemsize)
    n_i, n_k = n_rows // tm, K // tk

    # Compile-time Python float -> baked into the kernel as a literal
    # (fixes the "kernel captures constants" error).
    inv_denom = 1.0 / (4.0 * float(n_rows) ** 2 * float(K) ** 2)

    grid_spec = pltpu.PrefetchScalarGridSpec(
        num_scalar_prefetch=0,
        grid=(n_i, n_k),
        in_specs=[
            pl.BlockSpec((n_rows, tk), lambda i, k: (0, k)),   # F k-tile (all rows)
            pl.BlockSpec((tm, n_rows), lambda i, k: (i, 0)),   # style-gram rows (DMA'd once per i)
        ],
        out_specs=pl.BlockSpec((1, 8, 128), lambda i, k: (i, 0, 0)),
        scratch_shapes=[pltpu.VMEM((tm, n_rows), jnp.float32)],
    )
    partials = pl.pallas_call(
        functools.partial(_sloss_kernel, block_m=tm, inv_denom=inv_denom),
        out_shape=jax.ShapeDtypeStruct((n_i, 8, 128), jnp.float32),
        grid_spec=grid_spec,
        compiler_params=pltpu.CompilerParams(
            dimension_semantics=("parallel", "arbitrary"),
            vmem_limit_bytes=48 * 1024 * 1024,
        ),
    )(f, style_gram)

    loss = jnp.sum(partials[:, 0, 0])
    return x, loss


# --------------------------------------------------------------------------
# Pure-JAX reference for verification.
# --------------------------------------------------------------------------
def sloss_ref(x, style_x):
    B, N, W, H = x.shape

    def gram(m):
        fm = m.reshape(B * N, W * H).astype(jnp.float32)
        return fm @ fm.T

    g_style = gram(style_x)
    return jnp.sum((gram(x) - g_style) ** 2) / (4.0 * (B * N) ** 2 * (W * H) ** 2)


if __name__ == "__main__":
    key = jax.random.PRNGKey(0)
    k1, k2 = jax.random.split(key)

    B, N, W, H = 2, 4, 16, 16  # small NCHW feature map
    x = jax.random.normal(k1, (B, N, W, H), dtype=jnp.float32)
    style_fm = jax.random.normal(k2, (B, N, W, H), dtype=jnp.float32)
    w_layer = 0.5  # layer weight (unused by forward, as in the reference)

    # __init__ equivalent: precompute the style Gram with the tiled kernel
    # (block_k=128 forces the multi-step accumulation path on this toy shape).
    style_gram = gram_pallas(style_fm.reshape(B * N, W * H), block_k=128)

    # forward: once with an explicit small K tile (exercises init/accumulate/
    # finalize across 2 k-steps) and once with the auto-chosen tile.
    x_out, loss_tiled = sloss_pallas(x, style_gram, w=w_layer, block_k=128)
    _, loss_auto = sloss_pallas(x, style_gram, w=w_layer)
    jax.block_until_ready((x_out, loss_tiled, loss_auto))

    # check against the pure-JAX reference
    loss_ref_val = sloss_ref(x, style_fm)
    assert jnp.allclose(loss_tiled, loss_ref_val, rtol=1e-5, atol=1e-6), (
        loss_tiled, loss_ref_val)
    assert jnp.allclose(loss_auto, loss_ref_val, rtol=1e-5, atol=1e-6), (
        loss_auto, loss_ref_val)
    assert jnp.array_equal(x_out, x)

    print("KERNEL_OK")
</pallas_src>

<mosaic_0001>
module attributes {stable_mosaic.version = 11 : i64} {
  func.func @_gram_kernel(%arg0: i32, %arg1: i32, %arg2: memref<8x128xf32, #tpu.memory_space<vmem>>, %arg3: memref<8x8xf32, #tpu.memory_space<vmem>>, %arg4: memref<8x8xf32, #tpu.memory_space<vmem>>) attributes {dimension_semantics = [#tpu.dimension_semantics<parallel>, #tpu.dimension_semantics<arbitrary>], iteration_bounds = array<i64: 1, 2>, scalar_prefetch = 0 : i64, scratch_operands = 1 : i64, tpu.core_type = #tpu.core_type<tc>, window_params = [{transform_indices = @transform_0, window_bounds = array<i64: 8, 128>}, {transform_indices = @transform_1, window_bounds = array<i64: 8, 8>}]} {
    %c0_i32 = arith.constant 0 : i32
    %0 = arith.cmpi eq, %arg1, %c0_i32 : i32
    %1 = arith.extui %0 : i1 to i32
    %c0_i32_0 = arith.constant 0 : i32
    %2 = arith.cmpi ne, %1, %c0_i32_0 : i32
    scf.if %2 {
      %cst_8 = arith.constant 0.000000e+00 : f32
      %15 = vector.broadcast %cst_8 : f32 to vector<8x8xf32>
      %c0_9 = arith.constant 0 : index
      %c0_10 = arith.constant 0 : index
      %16 = vector.load %arg4[%c0_9, %c0_10] : memref<8x8xf32, #tpu.memory_space<vmem>>, vector<8x8xf32>
      tpu.vector_store %arg4[%c0_9, %c0_10], %15 {strides = array<i32>} : memref<8x8xf32, #tpu.memory_space<vmem>>, vector<8x8xf32>,
    } else {
    }
    %c8_i32 = arith.constant 8 : i32
    %3 = arith.muli %arg0, %c8_i32 : i32
    %4 = tpu.assume_multiple %3, 8 : i32
    %5 = arith.index_cast %4 : i32 to index
    %c0 = arith.constant 0 : index
    %6 = vector.load %arg2[%5, %c0] : memref<8x128xf32, #tpu.memory_space<vmem>>, vector<8x128xf32>
    %c0_1 = arith.constant 0 : index
    %c0_2 = arith.constant 0 : index
    %7 = vector.load %arg2[%c0_1, %c0_2] : memref<8x128xf32, #tpu.memory_space<vmem>>, vector<8x128xf32>
    %c0_3 = arith.constant 0 : index
    %c0_4 = arith.constant 0 : index
    %8 = vector.load %arg4[%c0_3, %c0_4] : memref<8x8xf32, #tpu.memory_space<vmem>>, vector<8x8xf32>
    %cst = arith.constant dense<0.000000e+00> : vector<8x8xf32>
    %9 = tpu.matmul %6, %7, %cst {dimension_numbers = #tpu.dot_dimension_numbers<[1], [1], [0], [0], [0, 0, 1, 0], [], []>} : vector<8x128xf32>, vector<8x128xf32>, vector<8x8xf32> -> vector<8x8xf32>
    %10 = arith.addf %8, %9 : vector<8x8xf32>
    %c0_5 = arith.constant 0 : index
    %c0_6 = arith.constant 0 : index
    %11 = vector.load %arg4[%c0_5, %c0_6] : memref<8x8xf32, #tpu.memory_space<vmem>>, vector<8x8xf32>
    tpu.vector_store %arg4[%c0_5, %c0_6], %10 {strides = array<i32>} : memref<8x8xf32, #tpu.memory_space<vmem>>, vector<8x8xf32>,
    %c1_i32 = arith.constant 1 : i32
    %12 = arith.cmpi eq, %arg1, %c1_i32 : i32
    %13 = arith.extui %12 : i1 to i32
    %c0_i32_7 = arith.constant 0 : i32
    %14 = arith.cmpi ne, %13, %c0_i32_7 : i32
    scf.if %14 {
      %c0_8 = arith.constant 0 : index
      %c0_9 = arith.constant 0 : index
      %15 = vector.load %arg4[%c0_8, %c0_9] : memref<8x8xf32, #tpu.memory_space<vmem>>, vector<8x8xf32>
      %c0_10 = arith.constant 0 : index
      %c0_11 = arith.constant 0 : index
      %16 = vector.load %arg3[%c0_10, %c0_11] : memref<8x8xf32, #tpu.memory_space<vmem>>, vector<8x8xf32>
      tpu.vector_store %arg3[%c0_10, %c0_11], %15 {strides = array<i32>} : memref<8x8xf32, #tpu.memory_space<vmem>>, vector<8x8xf32>,
    } else {
    }
    return
  }
  func.func @transform_0(%arg0: i32, %arg1: i32) -> (i32, i32) {
    %c0_i32 = arith.constant 0 : i32
    %c0_i32_0 = arith.constant 0 : i32
    return %c0_i32, %arg1 : i32, i32
  }
  func.func @transform_1(%arg0: i32, %arg1: i32) -> (i32, i32) {
    %c0_i32 = arith.constant 0 : i32
    %c0_i32_0 = arith.constant 0 : i32
    return %arg0, %c0_i32 : i32, i32
  }
}

</mosaic_0001>

<llo_original>
// kernel: tpu_custom_call.1
$region0: #{tpu_custom_call.1}
  #allocation0 [shape = 'u32[]', space=smem, size = 0x4, offset = 0x4, fixed_abs, tag = 'smem constant byte address 0x4 - core index']
  #allocation1 [shape = 'u32[144,128]{1,0:T(1,128)}', space=vmem, size = 0x12000, scoped, tag = 'internal scratch']
  #allocation2 [shape = 'f32[8,8]{1,0:T(8,128)}', space=vmem, size = 0x1000, scoped, tag = 'scratch operand']
  %s0 = inlined_call_operand.hbm [shape: f32[8,256], index: 0, kind: input, shape index: {}]
  %s1 = inlined_call_operand.hbm [shape: f32[8,8], index: 1, kind: output, shape index: {}]
  %s2 = sld [smem:[#allocation0]]
  $region49: #{tpu_custom_call.1} parent=0
    _
  %s4 = ssub.s32 1, %s2
  %s5 = scalar_select 0, %s4, %s2
  $region1: #{tpu_custom_call.1} parent=0
    #allocation3 [shape = 'u8[8192]{0}', space=vmem, size = 0x2000, scoped, tag = 'input window, operand 0']
    #allocation4 [shape = 's32[2]{0}', space=sflag, size = 0x8, scoped, tag = 'scoped memory for tpu_custom_call.1']
    #allocation5 [shape = 's32[2]{0}', space=sflag, size = 0x8, scoped, tag = 'scoped memory for tpu_custom_call.1']
    #allocation6 [shape = 'u8[4096]{0}', space=vmem, size = 0x1000, scoped, tag = 'output window, operand 0, single buffered']
    %6 = vsyncpa [#allocation4], 0
    %s7 = scalar_lea.sflag [#allocation4], 1
    %8 = vsyncpa %s7, 0
    %9 = vsyncpa [#allocation5], 0
    loop: start=0, step=1, limit=4
    $region2: #{tpu_custom_call.1} parent=1 // loop_pre_header
      _
    $region3: #{tpu_custom_call.1} parent=1 // loop_header
      %s11 = sphi 0, %s15
      %p12 = scmp.ge.s32.totalorder %s11, 4
      %s18 = sphi 0, %s30
      %s19 = sphi 0, %s26
      %s20 = sphi 0, %s18
      %s21 = sphi 0, %s19
      %s22 = sphi 0, %s20
      %s23 = sphi 0, %s21
      %s33 = sphi 0, %s35
      %s36 = sphi 0, %s33
      %s37 = sphi 0, %s36
      %s53 = sphi 0, %s37
      %s59 = sphi 0, %s61
      %s62 = sphi 0, %s59
      %s63 = sphi 0, %s62
      %s79 = sphi 0, %s63
    $region4: #{tpu_custom_call.1} parent=1 // loop_header_branch
      %14 = sbr.rel (%p12) target = $region8
    $region5: #{tpu_custom_call.1} parent=1 // loop_body
      %s16 = ssub.s32 %s11, 1
      %s17 = ssub.s32 %s11, 2
      %s24 = sadd.s32 1, %s19
      %p25 = scmp.ge.s32.totalorder %s24, 2
      %s26 = scalar_select %p25, 0, %s24
      %s27 = sadd.s32 1, %s18
      %s28 = scalar_select %p25, %s27, %s18
      %p29 = scmp.ge.s32.totalorder %s28, 1
      %s30 = scalar_select %p29, 0, %s28
      %s31 = ssub.s32 %s19, %s26
      %p32 = scmp.eq.s32.totalorder %s31, 0
      %s34 = sadd.s32 %s33, 1
      %s35 = scalar_select %p32, %s33, %s34
      %p38 = pneg %p32
      %p39 = scmp.eq.s32.totalorder %s11, 1
      %p40 = por %p38, %p39
      %p41 = scmp.ne.s32.totalorder %s33, %s36
      %p42 = scmp.eq.s32.totalorder %s11, 0
      %p43 = por %p41, %p42
      %p44 = scmp.ne.s32.totalorder %s33, %s36
      %p45 = scmp.eq.s32.totalorder %s16, 1
      %p46 = por %p44, %p45
      %p47 = scmp.ne.s32.totalorder %s36, %s37
      %p48 = scmp.eq.s32.totalorder %s16, 0
      %p49 = por %p47, %p48
      %p50 = scmp.ne.s32.totalorder %s36, %s37
      %p51 = scmp.eq.s32.totalorder %s17, 1
      %p52 = por %p50, %p51
      %p54 = scmp.ne.s32.totalorder %s37, %s53
      %p55 = scmp.eq.s32.totalorder %s17, 0
      %p56 = por %p54, %p55
      %s57 = ssub.s32 %s18, %s30
      %p58 = scmp.eq.s32.totalorder %s57, 0
      %s60 = sadd.s32 %s59, 1
      %s61 = scalar_select %p58, %s59, %s60
      %p64 = pneg %p58
      %p65 = scmp.eq.s32.totalorder %s11, 1
      %p66 = por %p64, %p65
      %p67 = scmp.ne.s32.totalorder %s59, %s62
      %p68 = scmp.eq.s32.totalorder %s11, 0
      %p69 = por %p67, %p68
      %p70 = scmp.ne.s32.totalorder %s59, %s62
      %p71 = scmp.eq.s32.totalorder %s16, 1
      %p72 = por %p70, %p71
      %p73 = scmp.ne.s32.totalorder %s62, %s63
      %p74 = scmp.eq.s32.totalorder %s16, 0
      %p75 = por %p73, %p74
      %p76 = scmp.ne.s32.totalorder %s62, %s63
      %p77 = scmp.eq.s32.totalorder %s17, 1
      %p78 = por %p76, %p77
      %p80 = scmp.ne.s32.totalorder %s63, %s79
      %p81 = scmp.eq.s32.totalorder %s17, 0
      %p82 = por %p80, %p81
      %p83 = scmp.le.s32.totalorder 1, %s11
      %p84 = scmp.lt.s32.totalorder %s11, 3
      %p85 = pnand %p83, %p84
      %p86 = pneg %p85
      // Predicated region
      $region9: #{tpu_custom_call.1} parent=5 // pred_check
        _
      $region10: #{tpu_custom_call.1} parent=5 // pred_check_branch
        %88 = sbr.rel (%p85) target = $region12
      $region11: #{tpu_custom_call.1} parent=5 // pred_region
        %s89 = ssub.s32 %s11, 1
      $region12: #{tpu_custom_call.1} parent=5 // pred_fallthru
        _
      %p90 = scmp.lt.s32.totalorder %s11, 2
      // Predicated region
      $region13: #{tpu_custom_call.1} parent=5 // pred_check
        %p91 = pneg %p90
      $region14: #{tpu_custom_call.1} parent=5 // pred_check_branch
        %93 = sbr.rel (%p91) target = $region16
      $region15: #{tpu_custom_call.1} parent=5 // pred_region
        // Predicated region
        $region17: #{tpu_custom_call.1} parent=15 // pred_check
          %p94 = pneg %p43
        $region18: #{tpu_custom_call.1} parent=15 // pred_check_branch
          %96 = sbr.rel (%p94) target = $region20
        $region19: #{tpu_custom_call.1} parent=15 // pred_region
          %s97 = sand.u32 %s33, 1
          %s98 = scalar_lea.sflag [#allocation4], %s97
          %s99 = sand.u32 %s33, 1
          %s100 = smul.addr %s99, 8
          %s101 = scalar_lea.vmem [#allocation3], %s100
          %s103 = ssub.s32 128, 128
          %104 = vsyncadd %s98, %s103
          %s105 = smul.addr %s19, 128
          %s106 = scalar_lea.hbm %s0, %s105
          %s108 = sshll.u32 %s101, 4
          %s109 = int_to_ptr.vmem [resolvable:$true] %s108
          %111 = dma.hbm_to_vmem [thread:$0]  %s106, 128, %s109, %s98
        $region20: #{tpu_custom_call.1} parent=15 // pred_fallthru
          _
      $region16: #{tpu_custom_call.1} parent=5 // pred_fallthru
        _
      %p112 = scmp.le.s32.totalorder 1, %s11
      %p113 = scmp.lt.s32.totalorder %s11, 3
      %p114 = pnand %p112, %p113
      %p115 = pneg %p114
      // Predicated region
      $region21: #{tpu_custom_call.1} parent=5 // pred_check
        _
      $region22: #{tpu_custom_call.1} parent=5 // pred_check_branch
        %117 = sbr.rel (%p114) target = $region24
      $region23: #{tpu_custom_call.1} parent=5 // pred_region
        %s118 = ssub.s32 %s11, 1
        %s119 = sand.u32 %s36, 1
        %s120 = scalar_lea.sflag [#allocation4], %s119
        %s121 = sand.u32 %s36, 1
        %s122 = smul.addr %s121, 8
        %s123 = scalar_lea.vmem [#allocation3], %s122
        // Predicated region
        $region25: #{tpu_custom_call.1} parent=23 // pred_check
          %p124 = pneg %p49
        $region26: #{tpu_custom_call.1} parent=23 // pred_check_branch
          %126 = sbr.rel (%p124) target = $region28
        $region27: #{tpu_custom_call.1} parent=23 // pred_region
          %127 = dma.done %s120, 128
        $region28: #{tpu_custom_call.1} parent=23 // pred_fallthru
          _
        %s128 = sand.u32 %s36, 1
        %s129 = scalar_lea.sflag [#allocation4], %s128
        %s130 = sand.u32 %s36, 1
        %s131 = smul.addr %s130, 8
        %s132 = scalar_lea.vmem [#allocation3], %s131
        %p133 = pneg %p49
        %p134 = pneg %p46
        %p135 = pneg %p75
        %p136 = pneg %p72
        %p137 = scmp.eq.s32.totalorder %s21, 0
        // Predicated region
        $region29: #{tpu_custom_call.1} parent=23 // pred_check
          %p138 = pneg %p137
        $region30: #{tpu_custom_call.1} parent=23 // pred_check_branch
          %140 = sbr.rel (%p138) target = $region32
        $region31: #{tpu_custom_call.1} parent=23 // pred_region
          %vm141 = vcmask 64512
          %142 = vst.msk [vmem:[#allocation2] sm:$0xff] %vm141, 0.0
        $region32: #{tpu_custom_call.1} parent=23 // pred_fallthru
          _
        %s143 = smul.u32 %s20, 8
        %s144 = scalar_lea.vmem %s123, %s143 [#allocation3]
        %v145 = vld [vmem:[%s144] sm:$0xff]
        %v146 = vld [vmem:[%s123] sm:$0xff]
        %v147 = vld [vmem:[#allocation2] sm:$0xff]
        %148 = vmatprep.subr.mxu0 0.0
        %149 = vmatpush1.xpose.msra.mxu0 %v146
        %150 = vmatprep.subr.mxu0 0.0
        %151 = vmatpush1.xpose.msra.mxu0 0.0
        %152 = vmatprep.subr.mxu0 0.0
        %153 = vmatpush1.xpose.msra.mxu0 0.0
        %154 = vmatprep.subr.mxu0 0.0
        %155 = vmatpush1.xpose.msra.mxu0 0.0
        %156 = vmatprep.subr.mxu0 0.0
        %157 = vmatpush1.xpose.msra.mxu0 0.0
        %158 = vmatprep.subr.mxu0 0.0
        %159 = vmatpush1.xpose.msra.mxu0 0.0
        %160 = vmatprep.subr.mxu0 0.0
        %161 = vmatpush1.xpose.msra.mxu0 0.0
        %162 = vmatprep.subr.mxu0 0.0
        %163 = vmatpush1.xpose.msra.mxu0 0.0
        %164 = vmatprep.subr.mxu0 0.0
        %165 = vmatpush1.xpose.msra.mxu0 0.0
        %166 = vmatprep.subr.mxu0 0.0
        %167 = vmatpush1.xpose.msra.mxu0 0.0
        %168 = vmatprep.subr.mxu0 0.0
        %169 = vmatpush1.xpose.msra.mxu0 0.0
        %170 = vmatprep.subr.mxu0 0.0
        %171 = vmatpush1.xpose.msra.mxu0 0.0
        %172 = vmatprep.subr.mxu0 0.0
        %173 = vmatpush1.xpose.msra.mxu0 0.0
        %174 = vmatprep.subr.mxu0 0.0
        %175 = vmatpush1.xpose.msra.mxu0 0.0
        %176 = vmatprep.subr.mxu0 0.0
        %177 = vmatpush1.xpose.msra.mxu0 0.0
        %178 = vmatprep.subr.mxu0 0.0
        %179 = vmatpush1.xpose.msra.mxu0 0.0
        %180 = vmatprep.subr.mxu0 0.0
        %181 = vmatpush1.xpose.msra.mxu0 0.0
        %182 = vmatprep.subr.mxu0 0.0
        %183 = vmatpush1.xpose.msra.mxu0 0.0
        %184 = vmatprep.subr.mxu0 0.0
        %185 = vmatpush1.xpose.msra.mxu0 0.0
        %186 = vmatprep.subr.mxu0 0.0
        %187 = vmatpush1.xpose.msra.mxu0 0.0
        %188 = vmatprep.subr.mxu0 0.0
        %189 = vmatpush1.xpose.msra.mxu0 0.0
        %190 = vmatprep.subr.mxu0 0.0
        %191 = vmatpush1.xpose.msra.mxu0 0.0
        %192 = vmatprep.subr.mxu0 0.0
        %193 = vmatpush1.xpose.msra.mxu0 0.0
        %194 = vmatprep.subr.mxu0 0.0
        %195 = vmatpush1.xpose.msra.mxu0 0.0
        %196 = vmatprep.subr.mxu0 0.0
        %197 = vmatpush1.xpose.msra.mxu0 0.0
        %198 = vmatprep.subr.mxu0 0.0
        %199 = vmatpush1.xpose.msra.mxu0 0.0
        %200 = vmatprep.subr.mxu0 0.0
        %201 = vmatpush1.xpose.msra.mxu0 0.0
        %202 = vmatprep.subr.mxu0 0.0
        %203 = vmatpush1.xpose.msra.mxu0 0.0
        %204 = vmatprep.subr.mxu0 0.0
        %205 = vmatpush1.xpose.msra.mxu0 0.0
        %206 = vmatprep.subr.mxu0 0.0
        %207 = vmatpush1.xpose.msra.mxu0 0.0
        %208 = vmatprep.subr.mxu0 0.0
        %209 = vmatpush1.xpose.msra.mxu0 0.0
        %210 = vmatprep.subr.mxu0 0.0
        %211 = vmatpush1.xpose.msra.mxu0 0.0
        %212 = vmatprep.mubr.f32.mxu0 0.0
        %213 = vmatmul.mubr.f32.gmra.mrb[0].mxu0 %v145
        %v214 = vpop.f32.mrb[0].mxu0
        %v215 = vadd.f32 0.0, %v214
        %v216 = vpop.f32.mrb[0].mxu0
        %217 = vdwg.mxu0
        %v218 = vadd.f32 %v147, %v215
        %vm219 = vcmask 64512
        %220 = vst.msk [vmem:[#allocation2] sm:$0xff] %vm219, %v218
        %p221 = scmp.eq.s32.totalorder %s21, 1
        // Predicated region
        $region33: #{tpu_custom_call.1} parent=23 // pred_check
          %p222 = pneg %p221
        $region34: #{tpu_custom_call.1} parent=23 // pred_check_branch
          %224 = sbr.rel (%p222) target = $region36
        $region35: #{tpu_custom_call.1} parent=23 // pred_region
          %v225 = vld [vmem:[#allocation2] sm:$0xff]
          %226 = vst.msk [vmem:[#allocation6] sm:$0xff] %vm219, %v225
        $region36: #{tpu_custom_call.1} parent=23 // pred_fallthru
          _
        // Predicated region
        $region37: #{tpu_custom_call.1} parent=23 // pred_check
          %p227 = pneg %p72
        $region38: #{tpu_custom_call.1} parent=23 // pred_check_branch
          %229 = sbr.rel (%p227) target = $region40
        $region39: #{tpu_custom_call.1} parent=23 // pred_region
          %s231 = ssub.s32 128, 128
          %232 = vsyncadd [#allocation5], %s231
          %s233 = smul.addr %s20, 128
          %s234 = scalar_lea.hbm %s1, %s233
          %s236 = sshll.u32 [#allocation6], 4
          %s237 = int_to_ptr.vmem [resolvable:$true] %s236
          %239 = dma.vmem_to_hbm [thread:$0]  %s237, 128, %s234, [#allocation5]
        $region40: #{tpu_custom_call.1} parent=23 // pred_fallthru
          _
        // Predicated region
        $region41: #{tpu_custom_call.1} parent=23 // pred_check
          %p240 = pneg %p72
        $region42: #{tpu_custom_call.1} parent=23 // pred_check_branch
          %242 = sbr.rel (%p240) target = $region44
        $region43: #{tpu_custom_call.1} parent=23 // pred_region
          %243 = dma.done [#allocation5], 128
        $region44: #{tpu_custom_call.1} parent=23 // pred_fallthru
          _
      $region24: #{tpu_custom_call.1} parent=5 // pred_fallthru
        _
      %p244 = scmp.le.s32.totalorder 2, %s11
      // Predicated region
      $region45: #{tpu_custom_call.1} parent=5 // pred_check
        %p245 = pneg %p244
      $region46: #{tpu_custom_call.1} parent=5 // pred_check_branch
        %247 = sbr.rel (%p245) target = $region48
      $region47: #{tpu_custom_call.1} parent=5 // pred_region
        %s248 = ssub.s32 %s11, 2
      $region48: #{tpu_custom_call.1} parent=5 // pred_fallthru
        _
    $region6: #{tpu_custom_call.1} parent=1 // loop_footer
      %s15 = sadd.s32 1, %s11
    $region7: #{tpu_custom_call.1} parent=1 // loop_footer_branch
      %10 = sbr.rel target = $region3
    $region8: #{tpu_custom_call.1} parent=1 // loop_exit
      _
    %249 = vsyncpa [#allocation4], 1
    %s250 = scalar_lea.sflag [#allocation4], 1
    %251 = vsyncpa %s250, 1
    %252 = vsyncpa [#allocation5], 1
    %s253 = scalar_lea.sflag [#allocation5], 1
    %254 = vsyncpa %s253, 1

</llo_original>
